<compile_context>
chip_gen: v7x
topology: tpu7x:2x2x1
jax: 0.10.0
libtpu: 0.0.40
codegen_flags: <defaults>
</compile_context>

<pallas_src>
import jax
import jax.numpy as jnp
from jax.experimental import pallas as pl
from jax.experimental.pallas import tpu as pltpu


# ----------------------------- helpers -----------------------------

def _round_up(x, m):
    return ((x + m - 1) // m) * m


# ----------------------------- fused Pallas kernel -----------------------------

def _make_fused_mlp_kernel(n_hidden, has_output):
    """Builds a kernel operating on one batch tile, looping over layers in-VMEM."""

    def kernel(*refs):
        x_ref = refs[0]
        o_ref = refs[-1]
        idx = 1
        h = x_ref[...]  # (TILE_B, Din) f32
        for _ in range(n_hidden):
            w_ref, scale_ref, shift_ref = refs[idx], refs[idx + 1], refs[idx + 2]
            idx += 3
            # Linear (bias folded into shift) -> BatchNorm (running stats) -> ReLU
            y = jnp.dot(h, w_ref[...], preferred_element_type=jnp.float32)
            y = y * scale_ref[...] + shift_ref[...]
            h = jnp.maximum(y, 0.0)
            # TODO(synk): Dropout omitted (eval-mode identity). For training, use
            # pltpu.prng_seed / pltpu.prng_random_bits per batch tile.
        if has_output:
            wf_ref, bf_ref = refs[idx], refs[idx + 1]
            # Dout=1 projection on the VPU/XLU: elementwise mul + lane reduction.
            # Avoids a 1-lane-wide MXU matmul and its masked partial stores.
            h = jnp.sum(h * wf_ref[...], axis=-1, keepdims=True) + bf_ref[...]
        o_ref[...] = h.astype(o_ref.dtype)

    return kernel


def mlp_forward(x, hidden_params, out_params, *, tile_b=512):
    """Fused MLP forward. x: (B, Din) f32."""
    B, Din = x.shape
    # Tile sized for the smallest VMEM generation (v7x: 64 MiB physical); for
    # this model the working set is tiny, so the tile is batch-limited.
    tile_b = min(tile_b, _round_up(B, 8))
    Bp = _round_up(B, tile_b)
    if Bp != B:
        x = jnp.pad(x, ((0, Bp - B), (0, 0)))

    n_hidden = len(hidden_params)
    has_output = out_params is not None
    dims = [Din] + [int(p["w"].shape[1]) for p in hidden_params]
    d_out = 1 if has_output else dims[-1]

    const_map = lambda i: (0, 0)  # weights stay resident across batch-grid steps

    operands = [x]
    in_specs = [pl.BlockSpec((tile_b, Din), lambda i: (i, 0))]
    for p in hidden_params:
        operands += [p["w"], p["scale"], p["shift"]]
        in_specs += [
            pl.BlockSpec(p["w"].shape, const_map),
            pl.BlockSpec(p["scale"].shape, const_map),
            pl.BlockSpec(p["shift"].shape, const_map),
        ]
    if has_output:
        operands += [out_params["w_row"], out_params["b"]]
        in_specs += [
            pl.BlockSpec(out_params["w_row"].shape, const_map),
            pl.BlockSpec(out_params["b"].shape, const_map),
        ]

    # Advisory cost estimate for the XLA scheduler.
    flops = 2 * Bp * sum(dims[k] * dims[k + 1] for k in range(n_hidden))
    if has_output:
        flops += 2 * Bp * dims[-1]
    bytes_accessed = 4 * (Bp * Din + Bp * d_out)
    for op in operands[1:]:
        bytes_accessed += int(op.size) * op.dtype.itemsize

    out = pl.pallas_call(
        _make_fused_mlp_kernel(n_hidden, has_output),
        out_shape=jax.ShapeDtypeStruct((Bp, d_out), jnp.float32),
        grid=(Bp // tile_b,),
        in_specs=in_specs,
        out_specs=pl.BlockSpec((tile_b, d_out), lambda i: (i, 0)),
        compiler_params=pltpu.CompilerParams(
            dimension_semantics=("parallel",),      # shard batch across TCs (v7x)
            vmem_limit_bytes=32 * 1024 * 1024,      # safe on v5e/v6e/v7x
        ),
        cost_estimate=pl.CostEstimate(
            flops=flops, transcendentals=0, bytes_accessed=bytes_accessed
        ),
    )(*operands)
    return out[:B]


# ----------------------------- parameters -----------------------------

def init_mlp_params(key, input_dim, embed_dims, output_layer=True):
    """Raw parameters mirroring the PyTorch module (Linear + BatchNorm1d stats)."""
    params = []
    d_in = input_dim
    for d_out in embed_dims:
        key, k1, k2, k3, k4, k5, k6 = jax.random.split(key, 7)
        w = jax.random.normal(k1, (d_in, d_out), jnp.float32) * 0.05  # (in, out)
        b = jax.random.normal(k2, (1, d_out), jnp.float32) * 0.05
        gamma = 1.0 + 0.1 * jax.random.normal(k3, (1, d_out), jnp.float32)
        beta = 0.1 * jax.random.normal(k4, (1, d_out), jnp.float32)
        mean = 0.1 * jax.random.normal(k5, (1, d_out), jnp.float32)
        var = jnp.abs(1.0 + 0.1 * jax.random.normal(k6, (1, d_out), jnp.float32))
        params.append({"w": w, "b": b, "gamma": gamma, "beta": beta,
                       "mean": mean, "var": var})
        d_in = d_out
    out_params = None
    if output_layer:
        key, k1, k2 = jax.random.split(key, 3)
        wf = jax.random.normal(k1, (d_in, 1), jnp.float32) * 0.05
        bf = jax.random.normal(k2, (1, 1), jnp.float32) * 0.05
        out_params = {"w": wf, "b": bf}
    return params, out_params


def fold_params_for_kernel(raw_hidden, raw_out, eps=1e-5):
    """Fold BN (running stats) and the Linear bias into per-feature scale/shift."""
    hidden = []
    for p in raw_hidden:
        inv_std = 1.0 / jnp.sqrt(p["var"] + eps)
        scale = p["gamma"] * inv_std
        shift = p["beta"] - p["mean"] * scale + p["b"] * scale  # bias folded in
        hidden.append({"w": p["w"], "scale": scale, "shift": shift})
    out = None
    if raw_out is not None:
        d_in = raw_out["w"].shape[0]
        out = {"w_row": raw_out["w"].reshape(1, d_in), "b": raw_out["b"]}
    return hidden, out


# ----------------------------- pure-JAX reference -----------------------------

def mlp_forward_ref(x, raw_hidden, raw_out, eps=1e-5):
    for p in raw_hidden:
        y = x @ p["w"] + p["b"]
        y = (y - p["mean"]) / jnp.sqrt(p["var"] + eps) * p["gamma"] + p["beta"]
        x = jnp.maximum(y, 0.0)
    if raw_out is not None:
        x = x @ raw_out["w"] + raw_out["b"]
    return x


# --------------------------------- main ------------------------------------

if __name__ == "__main__":
    key = jax.random.PRNGKey(0)
    k_params, k_x = jax.random.split(key)

    batch = 8
    input_dim = 16
    embed_dims = (32, 16)
    dropout = 0.1  # unused in eval mode

    raw_hidden, raw_out = init_mlp_params(k_params, input_dim, embed_dims)
    hidden_params, out_params = fold_params_for_kernel(raw_hidden, raw_out)
    x = jax.random.normal(k_x, (batch, input_dim), jnp.float32)

    out = mlp_forward(x, hidden_params, out_params)
    out = jax.block_until_ready(out)

    ref = mlp_forward_ref(x, raw_hidden, raw_out)
    assert out.shape == (batch, 1), out.shape
    assert jnp.allclose(out, ref, atol=1e-4, rtol=1e-4), (out, ref)

    print("KERNEL_OK")
</pallas_src>

<mosaic_0001>
module attributes {stable_mosaic.version = 11 : i64} {
  func.func @kernel(%arg0: i32, %arg1: memref<8x16xf32, #tpu.memory_space<vmem>>, %arg2: memref<16x32xf32, #tpu.memory_space<vmem>>, %arg3: memref<1x32xf32, #tpu.memory_space<vmem>>, %arg4: memref<1x32xf32, #tpu.memory_space<vmem>>, %arg5: memref<32x16xf32, #tpu.memory_space<vmem>>, %arg6: memref<1x16xf32, #tpu.memory_space<vmem>>, %arg7: memref<1x16xf32, #tpu.memory_space<vmem>>, %arg8: memref<1x16xf32, #tpu.memory_space<vmem>>, %arg9: memref<1x1xf32, #tpu.memory_space<vmem>>, %arg10: memref<8x1xf32, #tpu.memory_space<vmem>>) attributes {dimension_semantics = [#tpu.dimension_semantics<parallel>], iteration_bounds = array<i64: 1>, scalar_prefetch = 0 : i64, scratch_operands = 0 : i64, tpu.core_type = #tpu.core_type<tc>, window_params = [{transform_indices = @transform_0, window_bounds = array<i64: 8, 16>}, {pipeline_mode = #tpu.pipeline_mode<synchronous>, transform_indices = @transform_1, window_bounds = array<i64: 16, 32>}, {pipeline_mode = #tpu.pipeline_mode<synchronous>, transform_indices = @transform_2, window_bounds = array<i64: 1, 32>}, {pipeline_mode = #tpu.pipeline_mode<synchronous>, transform_indices = @transform_3, window_bounds = array<i64: 1, 32>}, {pipeline_mode = #tpu.pipeline_mode<synchronous>, transform_indices = @transform_4, window_bounds = array<i64: 32, 16>}, {pipeline_mode = #tpu.pipeline_mode<synchronous>, transform_indices = @transform_5, window_bounds = array<i64: 1, 16>}, {pipeline_mode = #tpu.pipeline_mode<synchronous>, transform_indices = @transform_6, window_bounds = array<i64: 1, 16>}, {pipeline_mode = #tpu.pipeline_mode<synchronous>, transform_indices = @transform_7, window_bounds = array<i64: 1, 16>}, {pipeline_mode = #tpu.pipeline_mode<synchronous>, transform_indices = @transform_8, window_bounds = array<i64: 1, 1>}, {transform_indices = @transform_9, window_bounds = array<i64: 8, 1>}]} {
    %c0 = arith.constant 0 : index
    %c0_0 = arith.constant 0 : index
    %0 = vector.load %arg1[%c0, %c0_0] : memref<8x16xf32, #tpu.memory_space<vmem>>, vector<8x16xf32>
    %c0_1 = arith.constant 0 : index
    %c0_2 = arith.constant 0 : index
    %1 = vector.load %arg2[%c0_1, %c0_2] : memref<16x32xf32, #tpu.memory_space<vmem>>, vector<16x32xf32>
    %cst = arith.constant dense<0.000000e+00> : vector<8x32xf32>
    %2 = tpu.matmul %0, %1, %cst {dimension_numbers = #tpu.dot_dimension_numbers<[1], [0], [0], [1], [0, 0, 1, 1], [], []>} : vector<8x16xf32>, vector<16x32xf32>, vector<8x32xf32> -> vector<8x32xf32>
    %c0_3 = arith.constant 0 : index
    %c0_4 = arith.constant 0 : index
    %3 = vector.load %arg3[%c0_3, %c0_4] : memref<1x32xf32, #tpu.memory_space<vmem>>, vector<1x32xf32>
    %4 = vector.broadcast %3 : vector<1x32xf32> to vector<8x32xf32>
    %5 = arith.mulf %2, %4 : vector<8x32xf32>
    %c0_5 = arith.constant 0 : index
    %c0_6 = arith.constant 0 : index
    %6 = vector.load %arg4[%c0_5, %c0_6] : memref<1x32xf32, #tpu.memory_space<vmem>>, vector<1x32xf32>
    %7 = vector.broadcast %6 : vector<1x32xf32> to vector<8x32xf32>
    %8 = arith.addf %5, %7 : vector<8x32xf32>
    %cst_7 = arith.constant 0.000000e+00 : f32
    %9 = vector.broadcast %cst_7 : f32 to vector<8x32xf32>
    %10 = arith.maximumf %8, %9 : vector<8x32xf32>
    %c0_8 = arith.constant 0 : index
    %c0_9 = arith.constant 0 : index
    %11 = vector.load %arg5[%c0_8, %c0_9] : memref<32x16xf32, #tpu.memory_space<vmem>>, vector<32x16xf32>
    %cst_10 = arith.constant dense<0.000000e+00> : vector<8x16xf32>
    %12 = tpu.matmul %10, %11, %cst_10 {dimension_numbers = #tpu.dot_dimension_numbers<[1], [0], [0], [1], [0, 0, 1, 1], [], []>} : vector<8x32xf32>, vector<32x16xf32>, vector<8x16xf32> -> vector<8x16xf32>
    %c0_11 = arith.constant 0 : index
    %c0_12 = arith.constant 0 : index
    %13 = vector.load %arg6[%c0_11, %c0_12] : memref<1x16xf32, #tpu.memory_space<vmem>>, vector<1x16xf32>
    %14 = vector.broadcast %13 : vector<1x16xf32> to vector<8x16xf32>
    %15 = arith.mulf %12, %14 : vector<8x16xf32>
    %c0_13 = arith.constant 0 : index
    %c0_14 = arith.constant 0 : index
    %16 = vector.load %arg7[%c0_13, %c0_14] : memref<1x16xf32, #tpu.memory_space<vmem>>, vector<1x16xf32>
    %17 = vector.broadcast %16 : vector<1x16xf32> to vector<8x16xf32>
    %18 = arith.addf %15, %17 : vector<8x16xf32>
    %cst_15 = arith.constant 0.000000e+00 : f32
    %19 = vector.broadcast %cst_15 : f32 to vector<8x16xf32>
    %20 = arith.maximumf %18, %19 : vector<8x16xf32>
    %c0_16 = arith.constant 0 : index
    %c0_17 = arith.constant 0 : index
    %21 = vector.load %arg8[%c0_16, %c0_17] : memref<1x16xf32, #tpu.memory_space<vmem>>, vector<1x16xf32>
    %22 = vector.broadcast %21 : vector<1x16xf32> to vector<8x16xf32>
    %23 = arith.mulf %20, %22 : vector<8x16xf32>
    %cst_18 = arith.constant dense<0.000000e+00> : vector<8xf32>
    %24 = vector.multi_reduction <add>, %23, %cst_18 [1] : vector<8x16xf32> to vector<8xf32>
    %25 = vector.shape_cast %24 : vector<8xf32> to vector<8x1xf32>
    %c0_19 = arith.constant 0 : index
    %c0_20 = arith.constant 0 : index
    %26 = vector.load %arg9[%c0_19, %c0_20] : memref<1x1xf32, #tpu.memory_space<vmem>>, vector<1x1xf32>
    %27 = vector.broadcast %26 : vector<1x1xf32> to vector<8x1xf32>
    %28 = arith.addf %25, %27 : vector<8x1xf32>
    %c0_21 = arith.constant 0 : index
    %c0_22 = arith.constant 0 : index
    %29 = vector.load %arg10[%c0_21, %c0_22] : memref<8x1xf32, #tpu.memory_space<vmem>>, vector<8x1xf32>
    tpu.vector_store %arg10[%c0_21, %c0_22], %28 {strides = array<i32>} : memref<8x1xf32, #tpu.memory_space<vmem>>, vector<8x1xf32>,
    return
  }
  func.func @transform_0(%arg0: i32) -> (i32, i32) {
    %c0_i32 = arith.constant 0 : i32
    %c0_i32_0 = arith.constant 0 : i32
    return %arg0, %c0_i32 : i32, i32
  }
  func.func @transform_1(%arg0: i32) -> (i32, i32) {
    %c0_i32 = arith.constant 0 : i32
    %c0_i32_0 = arith.constant 0 : i32
    %c0_i32_1 = arith.constant 0 : i32
    return %c0_i32, %c0_i32_0 : i32, i32
  }
  func.func @transform_2(%arg0: i32) -> (i32, i32) {
    %c0_i32 = arith.constant 0 : i32
    %c0_i32_0 = arith.constant 0 : i32
    %c0_i32_1 = arith.constant 0 : i32
    return %c0_i32, %c0_i32_0 : i32, i32
  }
  func.func @transform_3(%arg0: i32) -> (i32, i32) {
    %c0_i32 = arith.constant 0 : i32
    %c0_i32_0 = arith.constant 0 : i32
    %c0_i32_1 = arith.constant 0 : i32
    return %c0_i32, %c0_i32_0 : i32, i32
  }
  func.func @transform_4(%arg0: i32) -> (i32, i32) {
    %c0_i32 = arith.constant 0 : i32
    %c0_i32_0 = arith.constant 0 : i32
    %c0_i32_1 = arith.constant 0 : i32
    return %c0_i32, %c0_i32_0 : i32, i32
  }
  func.func @transform_5(%arg0: i32) -> (i32, i32) {
    %c0_i32 = arith.constant 0 : i32
    %c0_i32_0 = arith.constant 0 : i32
    %c0_i32_1 = arith.constant 0 : i32
    return %c0_i32, %c0_i32_0 : i32, i32
  }
  func.func @transform_6(%arg0: i32) -> (i32, i32) {
    %c0_i32 = arith.constant 0 : i32
    %c0_i32_0 = arith.constant 0 : i32
    %c0_i32_1 = arith.constant 0 : i32
    return %c0_i32, %c0_i32_0 : i32, i32
  }
  func.func @transform_7(%arg0: i32) -> (i32, i32) {
    %c0_i32 = arith.constant 0 : i32
    %c0_i32_0 = arith.constant 0 : i32
    %c0_i32_1 = arith.constant 0 : i32
    return %c0_i32, %c0_i32_0 : i32, i32
  }
  func.func @transform_8(%arg0: i32) -> (i32, i32) {
    %c0_i32 = arith.constant 0 : i32
    %c0_i32_0 = arith.constant 0 : i32
    %c0_i32_1 = arith.constant 0 : i32
    return %c0_i32, %c0_i32_0 : i32, i32
  }
  func.func @transform_9(%arg0: i32) -> (i32, i32) {
    %c0_i32 = arith.constant 0 : i32
    %c0_i32_0 = arith.constant 0 : i32
    return %arg0, %c0_i32 : i32, i32
  }
}

</mosaic_0001>

<llo_original>
// kernel: tpu_custom_call.1
$region0: #{tpu_custom_call.1}
  #allocation0 [shape = 'u32[]', space=smem, size = 0x4, offset = 0x4, fixed_abs, tag = 'smem constant byte address 0x4 - core index']
  #allocation1 [shape = 'u32[144,128]{1,0:T(1,128)}', space=vmem, size = 0x12000, scoped, tag = 'internal scratch']
  #allocation2 [shape = 'f32[1,1]{1,0:T(1,128)S(1)}', space=vmem, size = 0x200, scoped, tag = 'scoped memory for tpu_custom_call.1']
  %s0 = inlined_call_operand.vmem [shape: f32[8,16], index: 0, kind: input, shape index: {}]
  %s1 = inlined_call_operand.vmem [shape: f32[16,32], index: 1, kind: input, shape index: {}]
  %s2 = inlined_call_operand.vmem [shape: f32[1,32], index: 2, kind: input, shape index: {}]
  %s3 = inlined_call_operand.vmem [shape: f32[1,32], index: 3, kind: input, shape index: {}]
  %s4 = inlined_call_operand.vmem [shape: f32[32,16], index: 4, kind: input, shape index: {}]
  %s5 = inlined_call_operand.vmem [shape: f32[1,16], index: 5, kind: input, shape index: {}]
  %s6 = inlined_call_operand.vmem [shape: f32[1,16], index: 6, kind: input, shape index: {}]
  %s7 = inlined_call_operand.vmem [shape: f32[1,16], index: 7, kind: input, shape index: {}]
  %s8 = inlined_call_operand.<no memory space> [shape: f32[1,1], index: 8, kind: input, shape index: {}]
  %s9 = inlined_call_operand.vmem [shape: f32[8,1], index: 9, kind: output, shape index: {}]
  %s10 = sld [smem:[#allocation0]]
  $region46: #{tpu_custom_call.1} parent=0
    _
  %s12 = ssub.s32 1, %s10
  %s13 = scalar_select 0, %s12, %s10
  %v14 = vstv %s8
  %15 = vst [vmem:[#allocation2] sm:$0x1] %v14
  // Predicated region
  $region2: #{tpu_custom_call.1} parent=0 // pred_check
    _
  $region3: #{tpu_custom_call.1} parent=0 // pred_check_branch
    %17 = sbr.rel (0) target = $region5
  $region4: #{tpu_custom_call.1} parent=0 // pred_region
    _
  $region5: #{tpu_custom_call.1} parent=0 // pred_fallthru
    _
  // Predicated region
  $region6: #{tpu_custom_call.1} parent=0 // pred_check
    _
  $region7: #{tpu_custom_call.1} parent=0 // pred_check_branch
    %19 = sbr.rel (0) target = $region9
  $region8: #{tpu_custom_call.1} parent=0 // pred_region
    _
  $region9: #{tpu_custom_call.1} parent=0 // pred_fallthru
    _
  // Predicated region
  $region10: #{tpu_custom_call.1} parent=0 // pred_check
    _
  $region11: #{tpu_custom_call.1} parent=0 // pred_check_branch
    %21 = sbr.rel (0) target = $region13
  $region12: #{tpu_custom_call.1} parent=0 // pred_region
    _
  $region13: #{tpu_custom_call.1} parent=0 // pred_fallthru
    _
  // Predicated region
  $region14: #{tpu_custom_call.1} parent=0 // pred_check
    _
  $region15: #{tpu_custom_call.1} parent=0 // pred_check_branch
    %23 = sbr.rel (0) target = $region17
  $region16: #{tpu_custom_call.1} parent=0 // pred_region
    _
  $region17: #{tpu_custom_call.1} parent=0 // pred_fallthru
    _
  // Predicated region
  $region18: #{tpu_custom_call.1} parent=0 // pred_check
    _
  $region19: #{tpu_custom_call.1} parent=0 // pred_check_branch
    %25 = sbr.rel (0) target = $region21
  $region20: #{tpu_custom_call.1} parent=0 // pred_region
    _
  $region21: #{tpu_custom_call.1} parent=0 // pred_fallthru
    _
  // Predicated region
  $region22: #{tpu_custom_call.1} parent=0 // pred_check
    _
  $region23: #{tpu_custom_call.1} parent=0 // pred_check_branch
    %27 = sbr.rel (0) target = $region25
  $region24: #{tpu_custom_call.1} parent=0 // pred_region
    _
  $region25: #{tpu_custom_call.1} parent=0 // pred_fallthru
    _
  // Predicated region
  $region26: #{tpu_custom_call.1} parent=0 // pred_check
    _
  $region27: #{tpu_custom_call.1} parent=0 // pred_check_branch
    %29 = sbr.rel (0) target = $region29
  $region28: #{tpu_custom_call.1} parent=0 // pred_region
    _
  $region29: #{tpu_custom_call.1} parent=0 // pred_fallthru
    _
  // Predicated region
  $region30: #{tpu_custom_call.1} parent=0 // pred_check
    _
  $region31: #{tpu_custom_call.1} parent=0 // pred_check_branch
    %31 = sbr.rel (0) target = $region33
  $region32: #{tpu_custom_call.1} parent=0 // pred_region
    _
  $region33: #{tpu_custom_call.1} parent=0 // pred_fallthru
    _
  // Predicated region
  $region34: #{tpu_custom_call.1} parent=0 // pred_check
    _
  $region35: #{tpu_custom_call.1} parent=0 // pred_check_branch
    %33 = sbr.rel (0) target = $region37
  $region36: #{tpu_custom_call.1} parent=0 // pred_region
    _
  $region37: #{tpu_custom_call.1} parent=0 // pred_fallthru
    _
  %v34 = vld [vmem:[%s0] sm:$0xff]
  %v35 = vld [vmem:[%s1] sm:$0xff]
  %v36 = vld [vmem:[%s1 + $0x8] sm:$0xff]
  %vm37 = vcmask 130048
  %v39 = vsel %vm37, %v34, 0
  %41 = vmatprep.subr.mxu0 0.0
  %42 = vmatpush1.msra.mxu0 %v35
  %43 = vmatprep.subr.mxu0 0.0
  %44 = vmatpush1.msra.mxu0 %v36
  %45 = vmatprep.subr.mxu0 0.0
  %46 = vmatpush1.msra.mxu0 0.0
  %47 = vmatprep.subr.mxu0 0.0
  %48 = vmatpush1.msra.mxu0 0.0
  %49 = vmatprep.subr.mxu0 0.0
  %50 = vmatpush1.msra.mxu0 0.0
  %51 = vmatprep.subr.mxu0 0.0
  %52 = vmatpush1.msra.mxu0 0.0
  %53 = vmatprep.subr.mxu0 0.0
  %54 = vmatpush1.msra.mxu0 0.0
  %55 = vmatprep.subr.mxu0 0.0
  %56 = vmatpush1.msra.mxu0 0.0
  %57 = vmatprep.subr.mxu0 0.0
  %58 = vmatpush1.msra.mxu0 0.0
  %59 = vmatprep.subr.mxu0 0.0
  %60 = vmatpush1.msra.mxu0 0.0
  %61 = vmatprep.subr.mxu0 0.0
  %62 = vmatpush1.msra.mxu0 0.0
  %63 = vmatprep.subr.mxu0 0.0
  %64 = vmatpush1.msra.mxu0 0.0
  %65 = vmatprep.subr.mxu0 0.0
  %66 = vmatpush1.msra.mxu0 0.0
  %67 = vmatprep.subr.mxu0 0.0
  %68 = vmatpush1.msra.mxu0 0.0
  %69 = vmatprep.subr.mxu0 0.0
  %70 = vmatpush1.msra.mxu0 0.0
  %71 = vmatprep.subr.mxu0 0.0
  %72 = vmatpush1.msra.mxu0 0.0
  %73 = vmatprep.subr.mxu0 0.0
  %74 = vmatpush1.msra.mxu0 0.0
  %75 = vmatprep.subr.mxu0 0.0
  %76 = vmatpush1.msra.mxu0 0.0
  %77 = vmatprep.subr.mxu0 0.0
  %78 = vmatpush1.msra.mxu0 0.0
  %79 = vmatprep.subr.mxu0 0.0
  %80 = vmatpush1.msra.mxu0 0.0
  %81 = vmatprep.subr.mxu0 0.0
  %82 = vmatpush1.msra.mxu0 0.0
  %83 = vmatprep.subr.mxu0 0.0
  %84 = vmatpush1.msra.mxu0 0.0
  %85 = vmatprep.subr.mxu0 0.0
  %86 = vmatpush1.msra.mxu0 0.0
  %87 = vmatprep.subr.mxu0 0.0
  %88 = vmatpush1.msra.mxu0 0.0
  %89 = vmatprep.subr.mxu0 0.0
  %90 = vmatpush1.msra.mxu0 0.0
  %91 = vmatprep.subr.mxu0 0.0
  %92 = vmatpush1.msra.mxu0 0.0
  %93 = vmatprep.subr.mxu0 0.0
  %94 = vmatpush1.msra.mxu0 0.0
  %95 = vmatprep.subr.mxu0 0.0
  %96 = vmatpush1.msra.mxu0 0.0
  %97 = vmatprep.subr.mxu0 0.0
  %98 = vmatpush1.msra.mxu0 0.0
  %99 = vmatprep.subr.mxu0 0.0
  %100 = vmatpush1.msra.mxu0 0.0
  %101 = vmatprep.subr.mxu0 0.0
  %102 = vmatpush1.msra.mxu0 0.0
  %103 = vmatprep.subr.mxu0 0.0
  %104 = vmatpush1.msra.mxu0 0.0
  %105 = vmatprep.mubr.f32.mxu0 0.0
  %106 = vmatmul.mubr.f32.gmra.mrb[0].mxu0 %v39
  %v107 = vpop.f32.mrb[0].mxu0
  %v108 = vadd.f32 0.0, %v107
  %v109 = vpop.f32.mrb[0].mxu0
  %110 = vdwg.mxu0
  %v111 = vld [vmem:[%s2] sm:$0x1]
  %v113 = vlaneseq
  %v114 = vshrl.u32 %v113, 7
  %v115 = vsub.s32 0, %v114
  %v116 = vrot.slane %v111, %v115
  %v118 = vmul.f32 %v108, %v116
  %v119 = vld [vmem:[%s3] sm:$0x1]
  %v121 = vlaneseq
  %v122 = vshrl.u32 %v121, 7
  %v123 = vsub.s32 0, %v122
  %v124 = vrot.slane %v119, %v123
  %v126 = vadd.f32 %v118, %v124
  %v127 = vmax.f32 %v126, 0.0
  %v128 = vld [vmem:[%s4] sm:$0xff]
  %v129 = vld [vmem:[%s4 + $0x8] sm:$0xff]
  %v130 = vld [vmem:[%s4 + $0x10] sm:$0xff]
  %v131 = vld [vmem:[%s4 + $0x18] sm:$0xff]
  %vm132 = vcmask 261120
  %v134 = vsel %vm132, %v127, 0
  %136 = vmatprep.subr.mxu0 0.0
  %137 = vmatpush1.msra.mxu0 %v128
  %138 = vmatprep.subr.mxu0 0.0
  %139 = vmatpush1.msra.mxu0 %v129
  %140 = vmatprep.subr.mxu0 0.0
  %141 = vmatpush1.msra.mxu0 %v130
  %142 = vmatprep.subr.mxu0 0.0
  %143 = vmatpush1.msra.mxu0 %v131
  %144 = vmatprep.subr.mxu0 0.0
  %145 = vmatpush1.msra.mxu0 0.0
  %146 = vmatprep.subr.mxu0 0.0
  %147 = vmatpush1.msra.mxu0 0.0
  %148 = vmatprep.subr.mxu0 0.0
  %149 = vmatpush1.msra.mxu0 0.0
  %150 = vmatprep.subr.mxu0 0.0
  %151 = vmatpush1.msra.mxu0 0.0
  %152 = vmatprep.subr.mxu0 0.0
  %153 = vmatpush1.msra.mxu0 0.0
  %154 = vmatprep.subr.mxu0 0.0
  %155 = vmatpush1.msra.mxu0 0.0
  %156 = vmatprep.subr.mxu0 0.0
  %157 = vmatpush1.msra.mxu0 0.0
  %158 = vmatprep.subr.mxu0 0.0
  %159 = vmatpush1.msra.mxu0 0.0
  %160 = vmatprep.subr.mxu0 0.0
  %161 = vmatpush1.msra.mxu0 0.0
  %162 = vmatprep.subr.mxu0 0.0
  %163 = vmatpush1.msra.mxu0 0.0
  %164 = vmatprep.subr.mxu0 0.0
  %165 = vmatpush1.msra.mxu0 0.0
  %166 = vmatprep.subr.mxu0 0.0
  %167 = vmatpush1.msra.mxu0 0.0
  %168 = vmatprep.subr.mxu0 0.0
  %169 = vmatpush1.msra.mxu0 0.0
  %170 = vmatprep.subr.mxu0 0.0
  %171 = vmatpush1.msra.mxu0 0.0
  %172 = vmatprep.subr.mxu0 0.0
  %173 = vmatpush1.msra.mxu0 0.0
  %174 = vmatprep.subr.mxu0 0.0
  %175 = vmatpush1.msra.mxu0 0.0
  %176 = vmatprep.subr.mxu0 0.0
  %177 = vmatpush1.msra.mxu0 0.0
  %178 = vmatprep.subr.mxu0 0.0
  %179 = vmatpush1.msra.mxu0 0.0
  %180 = vmatprep.subr.mxu0 0.0
  %181 = vmatpush1.msra.mxu0 0.0
  %182 = vmatprep.subr.mxu0 0.0
  %183 = vmatpush1.msra.mxu0 0.0
  %184 = vmatprep.subr.mxu0 0.0
  %185 = vmatpush1.msra.mxu0 0.0
  %186 = vmatprep.subr.mxu0 0.0
  %187 = vmatpush1.msra.mxu0 0.0
  %188 = vmatprep.subr.mxu0 0.0
  %189 = vmatpush1.msra.mxu0 0.0
  %190 = vmatprep.subr.mxu0 0.0
  %191 = vmatpush1.msra.mxu0 0.0
  %192 = vmatprep.subr.mxu0 0.0
  %193 = vmatpush1.msra.mxu0 0.0
  %194 = vmatprep.subr.mxu0 0.0
  %195 = vmatpush1.msra.mxu0 0.0
  %196 = vmatprep.subr.mxu0 0.0
  %197 = vmatpush1.msra.mxu0 0.0
  %198 = vmatprep.subr.mxu0 0.0
  %199 = vmatpush1.msra.mxu0 0.0
  %200 = vmatprep.mubr.f32.mxu0 0.0
  %201 = vmatmul.mubr.f32.gmra.mrb[0].mxu0 %v134
  %v202 = vpop.f32.mrb[0].mxu0
  %v203 = vadd.f32 0.0, %v202
  %v204 = vpop.f32.mrb[0].mxu0
  %205 = vdwg.mxu0
  %v206 = vld [vmem:[%s5] sm:$0x1]
  %v208 = vlaneseq
  %v209 = vshrl.u32 %v208, 7
  %v210 = vsub.s32 0, %v209
  %v211 = vrot.slane %v206, %v210
  %v213 = vmul.f32 %v203, %v211
  %v214 = vld [vmem:[%s6] sm:$0x1]
  %v216 = vlaneseq
  %v217 = vshrl.u32 %v216, 7
  %v218 = vsub.s32 0, %v217
  %v219 = vrot.slane %v214, %v218
  %v221 = vadd.f32 %v213, %v219
  %v222 = vmax.f32 %v221, 0.0
  %v223 = vld [vmem:[%s7] sm:$0x1]
  %v225 = vlaneseq
  %v226 = vshrl.u32 %v225, 7
  %v227 = vsub.s32 0, %v226
  %v228 = vrot.slane %v223, %v227
  %v230 = vmul.f32 %v222, %v228
  %v231 = vsel %vm37, %v230, 0.0
  %232 = vadd.xlane.f32.xlu0 %v231
  %v233 = vpop.xlane.xlu0 %232
  %v234 = vld [vmem:[#allocation2] sm:$0x1]
  %v236 = vlaneseq
  %v237 = vshrl.u32 %v236, 7
  %v238 = vsub.s32 0, %v237
  %v239 = vrot.slane %v234, %v238
  %v241 = vadd.f32 %v233, %v239
  %vm242 = vcmask 7168
  %243 = vst.msk [vmem:[%s9] sm:$0xff] %vm242, %v241
  // Predicated region
  $region38: #{tpu_custom_call.1} parent=0 // pred_check
    _
  $region39: #{tpu_custom_call.1} parent=0 // pred_check_branch
    %245 = sbr.rel (0) target = $region41
  $region40: #{tpu_custom_call.1} parent=0 // pred_region
    _
  $region41: #{tpu_custom_call.1} parent=0 // pred_fallthru
    _
  // Predicated region
  $region42: #{tpu_custom_call.1} parent=0 // pred_check
    _
  $region43: #{tpu_custom_call.1} parent=0 // pred_check_branch
    %247 = sbr.rel (0) target = $region45
  $region44: #{tpu_custom_call.1} parent=0 // pred_region
    _
  $region45: #{tpu_custom_call.1} parent=0 // pred_fallthru
    _

</llo_original>
